<compile_context>
chip_gen: v7x
topology: tpu7x:2x2x1
jax: 0.10.0
libtpu: 0.0.40
codegen_flags: <defaults>
</compile_context>

<pallas_src>
import functools

import jax
import jax.numpy as jnp
from jax.experimental import pallas as pl
from jax.experimental.pallas import tpu as pltpu


def _assert_net_kernel(x_ref, y_ref, w1_ref, b1_ref, w2_ref, b2_ref,
                       o1_ref, o2_ref, o3_ref, *, n, cin, cout):
    # x_ref, y_ref:   (N*Cin,  tS, L) VMEM  (L = 128 lanes in the dense path)
    # o1/o2/o3_ref:   (N*Cout, tS, L) VMEM
    # w1_ref, w2_ref: (Cout, Cin) f32 SMEM   (scalar reads -> VPU broadcast)
    # b1_ref, b2_ref: (Cout,)     f32 SMEM   ('+3' already folded into b1)

    # Hoist all SMEM scalar reads once (the static unroll below would
    # otherwise re-emit sld per use).
    w1 = [[w1_ref[co, ci] for ci in range(cin)] for co in range(cout)]
    w2 = [[w2_ref[co, ci] for ci in range(cin)] for co in range(cout)]
    b1 = [b1_ref[co] for co in range(cout)]
    b2 = [b2_ref[co] for co in range(cout)]

    for b in range(n):                # static unroll over tiny batch
        # Dense (tS, L) per-(batch,channel) tiles; compute in f32.
        xs = [x_ref[b * cin + ci].astype(jnp.float32) for ci in range(cin)]
        ys = [y_ref[b * cin + ci].astype(jnp.float32) for ci in range(cin)]
        for co in range(cout):        # static unroll over 4 output channels
            x2 = xs[0] * w1[co][0]
            yc = ys[0] * w2[co][0]
            for ci in range(1, cin):
                x2 = x2 + xs[ci] * w1[co][ci]
                yc = yc + ys[ci] * w2[co][ci]
            x2 = x2 + b1[co]          # bias (includes the original '+ 3')
            yc = yc + b2[co]
            d = x2 - yc
            row = b * cout + co
            o1_ref[row] = d.astype(o1_ref.dtype)            # dense (tS,L) vst
            o2_ref[row] = (-d).astype(o2_ref.dtype)
            o3_ref[row] = (x2 + yc).astype(o3_ref.dtype)


def _pick_s_tile(s_total, rows_per_step, lane, itemsize):
    """Pick the sublane-tile (rows of 128 lanes) from a VMEM budget.

    rows_per_step = 2*N*Cin + 3*N*Cout rows moved per grid step; the
    double-buffered working set is 2 * rows_per_step * tS * lane * itemsize.
    Budget ~14 MiB keeps us under v5e's 16 MiB scoped-VMEM default (and well
    under v6e/v7x defaults) while making per-step HBM traffic large enough to
    amortize the ~0.35us/step pipeline overhead.
    """
    if s_total <= 8:
        return s_total
    budget = 14 * 1024 * 1024
    bytes_per_s_row = 2 * rows_per_step * lane * itemsize
    max_ts = (budget // bytes_per_s_row) // 8 * 8
    max_ts = max(8, min(s_total, max_ts))
    if s_total <= max_ts:
        return s_total                      # single step, full extent
    # Largest multiple of 8 that divides s_total and fits the budget.
    t = max_ts
    while t >= 8:
        if s_total % t == 0:
            return t
        t -= 8
    return max_ts                           # boundary block handled by Pallas


def assert_net_forward(x, y, w1, b1, w2, b2):
    """x, y: NCHW [N, 3, H, W]; w*: (Cout, Cin); b*: (Cout,).

    Returns 3 NCHW tensors [N, 4, H, W]: (x2 - y2, y2 - x2, x2 + y2), where
    x2 = conv1(x) + 3 and y2 = conv2(y).
    """
    # Shape checks corresponding to the torch _assert / assert statements
    # (kept in glue, removed from the kernel hot path).
    assert x.shape == y.shape, "Inputs should have the same shape"
    assert x.ndim == 4, f"expected 4D input (got {x.ndim}D input)"
    N, Cin, H, W = x.shape
    Cout = w1.shape[0]
    assert w1.shape == (Cout, Cin) and w2.shape == (Cout, Cin)
    assert b1.shape == (Cout,) and b2.shape == (Cout,)

    HW = H * W
    out_dtype = x.dtype

    # Pure reshapes (no transposes): channels stay leading; spatial becomes a
    # dense (sublane, lane) plane when HW is a multiple of 128, otherwise a
    # single full-extent lane row per channel (tiny-shape fallback).
    if HW % 128 == 0:
        S, L = HW // 128, 128
    else:
        S, L = 1, HW
    x_flat = x.reshape(N * Cin, S, L)
    y_flat = y.reshape(N * Cin, S, L)

    w1f = w1.astype(jnp.float32)
    w2f = w2.astype(jnp.float32)
    b1_eff = (b1.astype(jnp.float32) + 3.0)   # fold 'x1 + 3' into conv1 bias
    b2_eff = b2.astype(jnp.float32)

    rows_per_step = 2 * N * Cin + 3 * N * Cout
    t_s = _pick_s_tile(S, rows_per_step, L, jnp.dtype(out_dtype).itemsize)
    n_tiles = pl.cdiv(S, t_s)

    out_shape = jax.ShapeDtypeStruct((N * Cout, S, L), out_dtype)
    smem_spec = pl.BlockSpec(memory_space=pltpu.MemorySpace.SMEM)
    in_spec = pl.BlockSpec((N * Cin, t_s, L), lambda j: (0, j, 0))
    out_spec = pl.BlockSpec((N * Cout, t_s, L), lambda j: (0, j, 0))

    kernel = functools.partial(_assert_net_kernel, n=N, cin=Cin, cout=Cout)

    o1, o2, o3 = pl.pallas_call(
        kernel,
        out_shape=(out_shape, out_shape, out_shape),
        grid=(n_tiles,),
        in_specs=[in_spec, in_spec, smem_spec, smem_spec, smem_spec, smem_spec],
        out_specs=(out_spec, out_spec, out_spec),
        compiler_params=pltpu.CompilerParams(
            dimension_semantics=("parallel",)),
    )(x_flat, y_flat, w1f, b1_eff, w2f, b2_eff)

    def to_nchw(o):
        return o.reshape(N, Cout, H, W)      # pure reshape, no transpose

    return to_nchw(o1), to_nchw(o2), to_nchw(o3)


def _reference(x, y, w1, b1, w2, b2):
    # Pure-JAX reference of the forward pass for verification.
    def conv1x1(inp, w, b):
        out = jnp.einsum("oc,nchw->nohw", w, inp)
        return out + b[None, :, None, None]

    x2 = conv1x1(x, w1, b1) + 3.0
    yc = conv1x1(y, w2, b2)
    return x2 - yc, yc - x2, x2 + yc


if __name__ == "__main__":
    key = jax.random.PRNGKey(0)
    k_x, k_y, k_w1, k_b1, k_w2, k_b2 = jax.random.split(key, 6)

    N, Cin, H, W = 2, 3, 16, 16
    Cout = 4

    x = jax.random.normal(k_x, (N, Cin, H, W), dtype=jnp.float32)
    y = jax.random.normal(k_y, (N, Cin, H, W), dtype=jnp.float32)

    # torch Conv2d(3, 4, kernel_size=1) init: weight (Cout, Cin, 1, 1) stored
    # here as (Cout, Cin), bias (Cout,), uniform in +/- 1/sqrt(fan_in).
    bound = 1.0 / jnp.sqrt(float(Cin))
    w1 = jax.random.uniform(k_w1, (Cout, Cin), jnp.float32, -bound, bound)
    b1 = jax.random.uniform(k_b1, (Cout,), jnp.float32, -bound, bound)
    w2 = jax.random.uniform(k_w2, (Cout, Cin), jnp.float32, -bound, bound)
    b2 = jax.random.uniform(k_b2, (Cout,), jnp.float32, -bound, bound)

    outs = assert_net_forward(x, y, w1, b1, w2, b2)
    outs = jax.block_until_ready(outs)

    refs = _reference(x, y, w1, b1, w2, b2)
    for o, r in zip(outs, refs):
        assert o.shape == (N, Cout, H, W)
        assert jnp.allclose(o, r, atol=1e-5, rtol=1e-5), "mismatch vs reference"

    print("KERNEL_OK")
</pallas_src>

<mosaic_0001>
module attributes {stable_mosaic.version = 11 : i64} {
  func.func @_assert_net_kernel(%arg0: i32, %arg1: memref<6x2x128xf32, #tpu.memory_space<vmem>>, %arg2: memref<6x2x128xf32, #tpu.memory_space<vmem>>, %arg3: memref<4x3xf32, #tpu.memory_space<smem>>, %arg4: memref<4xf32, #tpu.memory_space<smem>>, %arg5: memref<4x3xf32, #tpu.memory_space<smem>>, %arg6: memref<4xf32, #tpu.memory_space<smem>>, %arg7: memref<8x2x128xf32, #tpu.memory_space<vmem>>, %arg8: memref<8x2x128xf32, #tpu.memory_space<vmem>>, %arg9: memref<8x2x128xf32, #tpu.memory_space<vmem>>) attributes {dimension_semantics = [#tpu.dimension_semantics<parallel>], iteration_bounds = array<i64: 1>, scalar_prefetch = 0 : i64, scratch_operands = 0 : i64, tpu.core_type = #tpu.core_type<tc>, window_params = [{transform_indices = @transform_0, window_bounds = array<i64: 6, 2, 128>}, {transform_indices = @transform_1, window_bounds = array<i64: 6, 2, 128>}, {transform_indices = @transform_2, window_bounds = array<i64: 4, 3>}, {transform_indices = @transform_3, window_bounds = array<i64: 4>}, {transform_indices = @transform_4, window_bounds = array<i64: 4, 3>}, {transform_indices = @transform_5, window_bounds = array<i64: 4>}, {transform_indices = @transform_6, window_bounds = array<i64: 8, 2, 128>}, {transform_indices = @transform_7, window_bounds = array<i64: 8, 2, 128>}, {transform_indices = @transform_8, window_bounds = array<i64: 8, 2, 128>}]} {
    %c0 = arith.constant 0 : index
    %c0_0 = arith.constant 0 : index
    %0 = memref.load %arg3[%c0, %c0_0] : memref<4x3xf32, #tpu.memory_space<smem>>
    %c0_1 = arith.constant 0 : index
    %c1 = arith.constant 1 : index
    %1 = memref.load %arg3[%c0_1, %c1] : memref<4x3xf32, #tpu.memory_space<smem>>
    %c0_2 = arith.constant 0 : index
    %c2 = arith.constant 2 : index
    %2 = memref.load %arg3[%c0_2, %c2] : memref<4x3xf32, #tpu.memory_space<smem>>
    %c1_3 = arith.constant 1 : index
    %c0_4 = arith.constant 0 : index
    %3 = memref.load %arg3[%c1_3, %c0_4] : memref<4x3xf32, #tpu.memory_space<smem>>
    %c1_5 = arith.constant 1 : index
    %c1_6 = arith.constant 1 : index
    %4 = memref.load %arg3[%c1_5, %c1_6] : memref<4x3xf32, #tpu.memory_space<smem>>
    %c1_7 = arith.constant 1 : index
    %c2_8 = arith.constant 2 : index
    %5 = memref.load %arg3[%c1_7, %c2_8] : memref<4x3xf32, #tpu.memory_space<smem>>
    %c2_9 = arith.constant 2 : index
    %c0_10 = arith.constant 0 : index
    %6 = memref.load %arg3[%c2_9, %c0_10] : memref<4x3xf32, #tpu.memory_space<smem>>
    %c2_11 = arith.constant 2 : index
    %c1_12 = arith.constant 1 : index
    %7 = memref.load %arg3[%c2_11, %c1_12] : memref<4x3xf32, #tpu.memory_space<smem>>
    %c2_13 = arith.constant 2 : index
    %c2_14 = arith.constant 2 : index
    %8 = memref.load %arg3[%c2_13, %c2_14] : memref<4x3xf32, #tpu.memory_space<smem>>
    %c3 = arith.constant 3 : index
    %c0_15 = arith.constant 0 : index
    %9 = memref.load %arg3[%c3, %c0_15] : memref<4x3xf32, #tpu.memory_space<smem>>
    %c3_16 = arith.constant 3 : index
    %c1_17 = arith.constant 1 : index
    %10 = memref.load %arg3[%c3_16, %c1_17] : memref<4x3xf32, #tpu.memory_space<smem>>
    %c3_18 = arith.constant 3 : index
    %c2_19 = arith.constant 2 : index
    %11 = memref.load %arg3[%c3_18, %c2_19] : memref<4x3xf32, #tpu.memory_space<smem>>
    %c0_20 = arith.constant 0 : index
    %c0_21 = arith.constant 0 : index
    %12 = memref.load %arg5[%c0_20, %c0_21] : memref<4x3xf32, #tpu.memory_space<smem>>
    %c0_22 = arith.constant 0 : index
    %c1_23 = arith.constant 1 : index
    %13 = memref.load %arg5[%c0_22, %c1_23] : memref<4x3xf32, #tpu.memory_space<smem>>
    %c0_24 = arith.constant 0 : index
    %c2_25 = arith.constant 2 : index
    %14 = memref.load %arg5[%c0_24, %c2_25] : memref<4x3xf32, #tpu.memory_space<smem>>
    %c1_26 = arith.constant 1 : index
    %c0_27 = arith.constant 0 : index
    %15 = memref.load %arg5[%c1_26, %c0_27] : memref<4x3xf32, #tpu.memory_space<smem>>
    %c1_28 = arith.constant 1 : index
    %c1_29 = arith.constant 1 : index
    %16 = memref.load %arg5[%c1_28, %c1_29] : memref<4x3xf32, #tpu.memory_space<smem>>
    %c1_30 = arith.constant 1 : index
    %c2_31 = arith.constant 2 : index
    %17 = memref.load %arg5[%c1_30, %c2_31] : memref<4x3xf32, #tpu.memory_space<smem>>
    %c2_32 = arith.constant 2 : index
    %c0_33 = arith.constant 0 : index
    %18 = memref.load %arg5[%c2_32, %c0_33] : memref<4x3xf32, #tpu.memory_space<smem>>
    %c2_34 = arith.constant 2 : index
    %c1_35 = arith.constant 1 : index
    %19 = memref.load %arg5[%c2_34, %c1_35] : memref<4x3xf32, #tpu.memory_space<smem>>
    %c2_36 = arith.constant 2 : index
    %c2_37 = arith.constant 2 : index
    %20 = memref.load %arg5[%c2_36, %c2_37] : memref<4x3xf32, #tpu.memory_space<smem>>
    %c3_38 = arith.constant 3 : index
    %c0_39 = arith.constant 0 : index
    %21 = memref.load %arg5[%c3_38, %c0_39] : memref<4x3xf32, #tpu.memory_space<smem>>
    %c3_40 = arith.constant 3 : index
    %c1_41 = arith.constant 1 : index
    %22 = memref.load %arg5[%c3_40, %c1_41] : memref<4x3xf32, #tpu.memory_space<smem>>
    %c3_42 = arith.constant 3 : index
    %c2_43 = arith.constant 2 : index
    %23 = memref.load %arg5[%c3_42, %c2_43] : memref<4x3xf32, #tpu.memory_space<smem>>
    %c0_44 = arith.constant 0 : index
    %24 = memref.load %arg4[%c0_44] : memref<4xf32, #tpu.memory_space<smem>>
    %c1_45 = arith.constant 1 : index
    %25 = memref.load %arg4[%c1_45] : memref<4xf32, #tpu.memory_space<smem>>
    %c2_46 = arith.constant 2 : index
    %26 = memref.load %arg4[%c2_46] : memref<4xf32, #tpu.memory_space<smem>>
    %c3_47 = arith.constant 3 : index
    %27 = memref.load %arg4[%c3_47] : memref<4xf32, #tpu.memory_space<smem>>
    %c0_48 = arith.constant 0 : index
    %28 = memref.load %arg6[%c0_48] : memref<4xf32, #tpu.memory_space<smem>>
    %c1_49 = arith.constant 1 : index
    %29 = memref.load %arg6[%c1_49] : memref<4xf32, #tpu.memory_space<smem>>
    %c2_50 = arith.constant 2 : index
    %30 = memref.load %arg6[%c2_50] : memref<4xf32, #tpu.memory_space<smem>>
    %c3_51 = arith.constant 3 : index
    %31 = memref.load %arg6[%c3_51] : memref<4xf32, #tpu.memory_space<smem>>
    %c0_52 = arith.constant 0 : index
    %c0_53 = arith.constant 0 : index
    %c0_54 = arith.constant 0 : index
    %32 = vector.load %arg1[%c0_52, %c0_53, %c0_54] : memref<6x2x128xf32, #tpu.memory_space<vmem>>, vector<1x2x128xf32>
    %33 = vector.shape_cast %32 : vector<1x2x128xf32> to vector<2x128xf32>
    %c1_55 = arith.constant 1 : index
    %c0_56 = arith.constant 0 : index
    %c0_57 = arith.constant 0 : index
    %34 = vector.load %arg1[%c1_55, %c0_56, %c0_57] : memref<6x2x128xf32, #tpu.memory_space<vmem>>, vector<1x2x128xf32>
    %35 = vector.shape_cast %34 : vector<1x2x128xf32> to vector<2x128xf32>
    %c2_58 = arith.constant 2 : index
    %c0_59 = arith.constant 0 : index
    %c0_60 = arith.constant 0 : index
    %36 = vector.load %arg1[%c2_58, %c0_59, %c0_60] : memref<6x2x128xf32, #tpu.memory_space<vmem>>, vector<1x2x128xf32>
    %37 = vector.shape_cast %36 : vector<1x2x128xf32> to vector<2x128xf32>
    %c0_61 = arith.constant 0 : index
    %c0_62 = arith.constant 0 : index
    %c0_63 = arith.constant 0 : index
    %38 = vector.load %arg2[%c0_61, %c0_62, %c0_63] : memref<6x2x128xf32, #tpu.memory_space<vmem>>, vector<1x2x128xf32>
    %39 = vector.shape_cast %38 : vector<1x2x128xf32> to vector<2x128xf32>
    %c1_64 = arith.constant 1 : index
    %c0_65 = arith.constant 0 : index
    %c0_66 = arith.constant 0 : index
    %40 = vector.load %arg2[%c1_64, %c0_65, %c0_66] : memref<6x2x128xf32, #tpu.memory_space<vmem>>, vector<1x2x128xf32>
    %41 = vector.shape_cast %40 : vector<1x2x128xf32> to vector<2x128xf32>
    %c2_67 = arith.constant 2 : index
    %c0_68 = arith.constant 0 : index
    %c0_69 = arith.constant 0 : index
    %42 = vector.load %arg2[%c2_67, %c0_68, %c0_69] : memref<6x2x128xf32, #tpu.memory_space<vmem>>, vector<1x2x128xf32>
    %43 = vector.shape_cast %42 : vector<1x2x128xf32> to vector<2x128xf32>
    %44 = vector.broadcast %0 : f32 to vector<2x128xf32>
    %45 = arith.mulf %33, %44 : vector<2x128xf32>
    %46 = vector.broadcast %12 : f32 to vector<2x128xf32>
    %47 = arith.mulf %39, %46 : vector<2x128xf32>
    %48 = vector.broadcast %1 : f32 to vector<2x128xf32>
    %49 = arith.mulf %35, %48 : vector<2x128xf32>
    %50 = arith.addf %45, %49 : vector<2x128xf32>
    %51 = vector.broadcast %13 : f32 to vector<2x128xf32>
    %52 = arith.mulf %41, %51 : vector<2x128xf32>
    %53 = arith.addf %47, %52 : vector<2x128xf32>
    %54 = vector.broadcast %2 : f32 to vector<2x128xf32>
    %55 = arith.mulf %37, %54 : vector<2x128xf32>
    %56 = arith.addf %50, %55 : vector<2x128xf32>
    %57 = vector.broadcast %14 : f32 to vector<2x128xf32>
    %58 = arith.mulf %43, %57 : vector<2x128xf32>
    %59 = arith.addf %53, %58 : vector<2x128xf32>
    %60 = vector.broadcast %24 : f32 to vector<2x128xf32>
    %61 = arith.addf %56, %60 : vector<2x128xf32>
    %62 = vector.broadcast %28 : f32 to vector<2x128xf32>
    %63 = arith.addf %59, %62 : vector<2x128xf32>
    %64 = arith.subf %61, %63 : vector<2x128xf32>
    %c0_70 = arith.constant 0 : index
    %c0_71 = arith.constant 0 : index
    %c0_72 = arith.constant 0 : index
    %65 = vector.load %arg7[%c0_70, %c0_71, %c0_72] : memref<8x2x128xf32, #tpu.memory_space<vmem>>, vector<1x2x128xf32>
    %66 = vector.shape_cast %65 : vector<1x2x128xf32> to vector<2x128xf32>
    %67 = vector.shape_cast %64 : vector<2x128xf32> to vector<1x2x128xf32>
    tpu.vector_store %arg7[%c0_70, %c0_71, %c0_72], %67 {strides = array<i32>} : memref<8x2x128xf32, #tpu.memory_space<vmem>>, vector<1x2x128xf32>,
    %cst = arith.constant 0.000000e+00 : f32
    %68 = vector.broadcast %cst : f32 to vector<2x128xf32>
    %69 = arith.subf %68, %64 : vector<2x128xf32>
    %c0_73 = arith.constant 0 : index
    %c0_74 = arith.constant 0 : index
    %c0_75 = arith.constant 0 : index
    %70 = vector.load %arg8[%c0_73, %c0_74, %c0_75] : memref<8x2x128xf32, #tpu.memory_space<vmem>>, vector<1x2x128xf32>
    %71 = vector.shape_cast %70 : vector<1x2x128xf32> to vector<2x128xf32>
    %72 = vector.shape_cast %69 : vector<2x128xf32> to vector<1x2x128xf32>
    tpu.vector_store %arg8[%c0_73, %c0_74, %c0_75], %72 {strides = array<i32>} : memref<8x2x128xf32, #tpu.memory_space<vmem>>, vector<1x2x128xf32>,
    %73 = arith.addf %61, %63 : vector<2x128xf32>
    %c0_76 = arith.constant 0 : index
    %c0_77 = arith.constant 0 : index
    %c0_78 = arith.constant 0 : index
    %74 = vector.load %arg9[%c0_76, %c0_77, %c0_78] : memref<8x2x128xf32, #tpu.memory_space<vmem>>, vector<1x2x128xf32>
    %75 = vector.shape_cast %74 : vector<1x2x128xf32> to vector<2x128xf32>
    %76 = vector.shape_cast %73 : vector<2x128xf32> to vector<1x2x128xf32>
    tpu.vector_store %arg9[%c0_76, %c0_77, %c0_78], %76 {strides = array<i32>} : memref<8x2x128xf32, #tpu.memory_space<vmem>>, vector<1x2x128xf32>,
    %77 = vector.broadcast %3 : f32 to vector<2x128xf32>
    %78 = arith.mulf %33, %77 : vector<2x128xf32>
    %79 = vector.broadcast %15 : f32 to vector<2x128xf32>
    %80 = arith.mulf %39, %79 : vector<2x128xf32>
    %81 = vector.broadcast %4 : f32 to vector<2x128xf32>
    %82 = arith.mulf %35, %81 : vector<2x128xf32>
    %83 = arith.addf %78, %82 : vector<2x128xf32>
    %84 = vector.broadcast %16 : f32 to vector<2x128xf32>
    %85 = arith.mulf %41, %84 : vector<2x128xf32>
    %86 = arith.addf %80, %85 : vector<2x128xf32>
    %87 = vector.broadcast %5 : f32 to vector<2x128xf32>
    %88 = arith.mulf %37, %87 : vector<2x128xf32>
    %89 = arith.addf %83, %88 : vector<2x128xf32>
    %90 = vector.broadcast %17 : f32 to vector<2x128xf32>
    %91 = arith.mulf %43, %90 : vector<2x128xf32>
    %92 = arith.addf %86, %91 : vector<2x128xf32>
    %93 = vector.broadcast %25 : f32 to vector<2x128xf32>
    %94 = arith.addf %89, %93 : vector<2x128xf32>
    %95 = vector.broadcast %29 : f32 to vector<2x128xf32>
    %96 = arith.addf %92, %95 : vector<2x128xf32>
    %97 = arith.subf %94, %96 : vector<2x128xf32>
    %c1_79 = arith.constant 1 : index
    %c0_80 = arith.constant 0 : index
    %c0_81 = arith.constant 0 : index
    %98 = vector.load %arg7[%c1_79, %c0_80, %c0_81] : memref<8x2x128xf32, #tpu.memory_space<vmem>>, vector<1x2x128xf32>
    %99 = vector.shape_cast %98 : vector<1x2x128xf32> to vector<2x128xf32>
    %100 = vector.shape_cast %97 : vector<2x128xf32> to vector<1x2x128xf32>
    tpu.vector_store %arg7[%c1_79, %c0_80, %c0_81], %100 {strides = array<i32>} : memref<8x2x128xf32, #tpu.memory_space<vmem>>, vector<1x2x128xf32>,
    %cst_82 = arith.constant 0.000000e+00 : f32
    %101 = vector.broadcast %cst_82 : f32 to vector<2x128xf32>
    %102 = arith.subf %101, %97 : vector<2x128xf32>
    %c1_83 = arith.constant 1 : index
    %c0_84 = arith.constant 0 : index
    %c0_85 = arith.constant 0 : index
    %103 = vector.load %arg8[%c1_83, %c0_84, %c0_85] : memref<8x2x128xf32, #tpu.memory_space<vmem>>, vector<1x2x128xf32>
    %104 = vector.shape_cast %103 : vector<1x2x128xf32> to vector<2x128xf32>
    %105 = vector.shape_cast %102 : vector<2x128xf32> to vector<1x2x128xf32>
    tpu.vector_store %arg8[%c1_83, %c0_84, %c0_85], %105 {strides = array<i32>} : memref<8x2x128xf32, #tpu.memory_space<vmem>>, vector<1x2x128xf32>,
    %106 = arith.addf %94, %96 : vector<2x128xf32>
    %c1_86 = arith.constant 1 : index
    %c0_87 = arith.constant 0 : index
    %c0_88 = arith.constant 0 : index
    %107 = vector.load %arg9[%c1_86, %c0_87, %c0_88] : memref<8x2x128xf32, #tpu.memory_space<vmem>>, vector<1x2x128xf32>
    %108 = vector.shape_cast %107 : vector<1x2x128xf32> to vector<2x128xf32>
    %109 = vector.shape_cast %106 : vector<2x128xf32> to vector<1x2x128xf32>
    tpu.vector_store %arg9[%c1_86, %c0_87, %c0_88], %109 {strides = array<i32>} : memref<8x2x128xf32, #tpu.memory_space<vmem>>, vector<1x2x128xf32>,
    %110 = vector.broadcast %6 : f32 to vector<2x128xf32>
    %111 = arith.mulf %33, %110 : vector<2x128xf32>
    %112 = vector.broadcast %18 : f32 to vector<2x128xf32>
    %113 = arith.mulf %39, %112 : vector<2x128xf32>
    %114 = vector.broadcast %7 : f32 to vector<2x128xf32>
    %115 = arith.mulf %35, %114 : vector<2x128xf32>
    %116 = arith.addf %111, %115 : vector<2x128xf32>
    %117 = vector.broadcast %19 : f32 to vector<2x128xf32>
    %118 = arith.mulf %41, %117 : vector<2x128xf32>
    %119 = arith.addf %113, %118 : vector<2x128xf32>
    %120 = vector.broadcast %8 : f32 to vector<2x128xf32>
    %121 = arith.mulf %37, %120 : vector<2x128xf32>
    %122 = arith.addf %116, %121 : vector<2x128xf32>
    %123 = vector.broadcast %20 : f32 to vector<2x128xf32>
    %124 = arith.mulf %43, %123 : vector<2x128xf32>
    %125 = arith.addf %119, %124 : vector<2x128xf32>
    %126 = vector.broadcast %26 : f32 to vector<2x128xf32>
    %127 = arith.addf %122, %126 : vector<2x128xf32>
    %128 = vector.broadcast %30 : f32 to vector<2x128xf32>
    %129 = arith.addf %125, %128 : vector<2x128xf32>
    %130 = arith.subf %127, %129 : vector<2x128xf32>
    %c2_89 = arith.constant 2 : index
    %c0_90 = arith.constant 0 : index
    %c0_91 = arith.constant 0 : index
    %131 = vector.load %arg7[%c2_89, %c0_90, %c0_91] : memref<8x2x128xf32, #tpu.memory_space<vmem>>, vector<1x2x128xf32>
    %132 = vector.shape_cast %131 : vector<1x2x128xf32> to vector<2x128xf32>
    %133 = vector.shape_cast %130 : vector<2x128xf32> to vector<1x2x128xf32>
    tpu.vector_store %arg7[%c2_89, %c0_90, %c0_91], %133 {strides = array<i32>} : memref<8x2x128xf32, #tpu.memory_space<vmem>>, vector<1x2x128xf32>,
    %cst_92 = arith.constant 0.000000e+00 : f32
    %134 = vector.broadcast %cst_92 : f32 to vector<2x128xf32>
    %135 = arith.subf %134, %130 : vector<2x128xf32>
    %c2_93 = arith.constant 2 : index
    %c0_94 = arith.constant 0 : index
    %c0_95 = arith.constant 0 : index
    %136 = vector.load %arg8[%c2_93, %c0_94, %c0_95] : memref<8x2x128xf32, #tpu.memory_space<vmem>>, vector<1x2x128xf32>
    %137 = vector.shape_cast %136 : vector<1x2x128xf32> to vector<2x128xf32>
    %138 = vector.shape_cast %135 : vector<2x128xf32> to vector<1x2x128xf32>
    tpu.vector_store %arg8[%c2_93, %c0_94, %c0_95], %138 {strides = array<i32>} : memref<8x2x128xf32, #tpu.memory_space<vmem>>, vector<1x2x128xf32>,
    %139 = arith.addf %127, %129 : vector<2x128xf32>
    %c2_96 = arith.constant 2 : index
    %c0_97 = arith.constant 0 : index
    %c0_98 = arith.constant 0 : index
    %140 = vector.load %arg9[%c2_96, %c0_97, %c0_98] : memref<8x2x128xf32, #tpu.memory_space<vmem>>, vector<1x2x128xf32>
    %141 = vector.shape_cast %140 : vector<1x2x128xf32> to vector<2x128xf32>
    %142 = vector.shape_cast %139 : vector<2x128xf32> to vector<1x2x128xf32>
    tpu.vector_store %arg9[%c2_96, %c0_97, %c0_98], %142 {strides = array<i32>} : memref<8x2x128xf32, #tpu.memory_space<vmem>>, vector<1x2x128xf32>,
    %143 = vector.broadcast %9 : f32 to vector<2x128xf32>
    %144 = arith.mulf %33, %143 : vector<2x128xf32>
    %145 = vector.broadcast %21 : f32 to vector<2x128xf32>
    %146 = arith.mulf %39, %145 : vector<2x128xf32>
    %147 = vector.broadcast %10 : f32 to vector<2x128xf32>
    %148 = arith.mulf %35, %147 : vector<2x128xf32>
    %149 = arith.addf %144, %148 : vector<2x128xf32>
    %150 = vector.broadcast %22 : f32 to vector<2x128xf32>
    %151 = arith.mulf %41, %150 : vector<2x128xf32>
    %152 = arith.addf %146, %151 : vector<2x128xf32>
    %153 = vector.broadcast %11 : f32 to vector<2x128xf32>
    %154 = arith.mulf %37, %153 : vector<2x128xf32>
    %155 = arith.addf %149, %154 : vector<2x128xf32>
    %156 = vector.broadcast %23 : f32 to vector<2x128xf32>
    %157 = arith.mulf %43, %156 : vector<2x128xf32>
    %158 = arith.addf %152, %157 : vector<2x128xf32>
    %159 = vector.broadcast %27 : f32 to vector<2x128xf32>
    %160 = arith.addf %155, %159 : vector<2x128xf32>
    %161 = vector.broadcast %31 : f32 to vector<2x128xf32>
    %162 = arith.addf %158, %161 : vector<2x128xf32>
    %163 = arith.subf %160, %162 : vector<2x128xf32>
    %c3_99 = arith.constant 3 : index
    %c0_100 = arith.constant 0 : index
    %c0_101 = arith.constant 0 : index
    %164 = vector.load %arg7[%c3_99, %c0_100, %c0_101] : memref<8x2x128xf32, #tpu.memory_space<vmem>>, vector<1x2x128xf32>
    %165 = vector.shape_cast %164 : vector<1x2x128xf32> to vector<2x128xf32>
    %166 = vector.shape_cast %163 : vector<2x128xf32> to vector<1x2x128xf32>
    tpu.vector_store %arg7[%c3_99, %c0_100, %c0_101], %166 {strides = array<i32>} : memref<8x2x128xf32, #tpu.memory_space<vmem>>, vector<1x2x128xf32>,
    %cst_102 = arith.constant 0.000000e+00 : f32
    %167 = vector.broadcast %cst_102 : f32 to vector<2x128xf32>
    %168 = arith.subf %167, %163 : vector<2x128xf32>
    %c3_103 = arith.constant 3 : index
    %c0_104 = arith.constant 0 : index
    %c0_105 = arith.constant 0 : index
    %169 = vector.load %arg8[%c3_103, %c0_104, %c0_105] : memref<8x2x128xf32, #tpu.memory_space<vmem>>, vector<1x2x128xf32>
    %170 = vector.shape_cast %169 : vector<1x2x128xf32> to vector<2x128xf32>
    %171 = vector.shape_cast %168 : vector<2x128xf32> to vector<1x2x128xf32>
    tpu.vector_store %arg8[%c3_103, %c0_104, %c0_105], %171 {strides = array<i32>} : memref<8x2x128xf32, #tpu.memory_space<vmem>>, vector<1x2x128xf32>,
    %172 = arith.addf %160, %162 : vector<2x128xf32>
    %c3_106 = arith.constant 3 : index
    %c0_107 = arith.constant 0 : index
    %c0_108 = arith.constant 0 : index
    %173 = vector.load %arg9[%c3_106, %c0_107, %c0_108] : memref<8x2x128xf32, #tpu.memory_space<vmem>>, vector<1x2x128xf32>
    %174 = vector.shape_cast %173 : vector<1x2x128xf32> to vector<2x128xf32>
    %175 = vector.shape_cast %172 : vector<2x128xf32> to vector<1x2x128xf32>
    tpu.vector_store %arg9[%c3_106, %c0_107, %c0_108], %175 {strides = array<i32>} : memref<8x2x128xf32, #tpu.memory_space<vmem>>, vector<1x2x128xf32>,
    %c3_109 = arith.constant 3 : index
    %c0_110 = arith.constant 0 : index
    %c0_111 = arith.constant 0 : index
    %176 = vector.load %arg1[%c3_109, %c0_110, %c0_111] : memref<6x2x128xf32, #tpu.memory_space<vmem>>, vector<1x2x128xf32>
    %177 = vector.shape_cast %176 : vector<1x2x128xf32> to vector<2x128xf32>
    %c4 = arith.constant 4 : index
    %c0_112 = arith.constant 0 : index
    %c0_113 = arith.constant 0 : index
    %178 = vector.load %arg1[%c4, %c0_112, %c0_113] : memref<6x2x128xf32, #tpu.memory_space<vmem>>, vector<1x2x128xf32>
    %179 = vector.shape_cast %178 : vector<1x2x128xf32> to vector<2x128xf32>
    %c5 = arith.constant 5 : index
    %c0_114 = arith.constant 0 : index
    %c0_115 = arith.constant 0 : index
    %180 = vector.load %arg1[%c5, %c0_114, %c0_115] : memref<6x2x128xf32, #tpu.memory_space<vmem>>, vector<1x2x128xf32>
    %181 = vector.shape_cast %180 : vector<1x2x128xf32> to vector<2x128xf32>
    %c3_116 = arith.constant 3 : index
    %c0_117 = arith.constant 0 : index
    %c0_118 = arith.constant 0 : index
    %182 = vector.load %arg2[%c3_116, %c0_117, %c0_118] : memref<6x2x128xf32, #tpu.memory_space<vmem>>, vector<1x2x128xf32>
    %183 = vector.shape_cast %182 : vector<1x2x128xf32> to vector<2x128xf32>
    %c4_119 = arith.constant 4 : index
    %c0_120 = arith.constant 0 : index
    %c0_121 = arith.constant 0 : index
    %184 = vector.load %arg2[%c4_119, %c0_120, %c0_121] : memref<6x2x128xf32, #tpu.memory_space<vmem>>, vector<1x2x128xf32>
    %185 = vector.shape_cast %184 : vector<1x2x128xf32> to vector<2x128xf32>
    %c5_122 = arith.constant 5 : index
    %c0_123 = arith.constant 0 : index
    %c0_124 = arith.constant 0 : index
    %186 = vector.load %arg2[%c5_122, %c0_123, %c0_124] : memref<6x2x128xf32, #tpu.memory_space<vmem>>, vector<1x2x128xf32>
    %187 = vector.shape_cast %186 : vector<1x2x128xf32> to vector<2x128xf32>
    %188 = vector.broadcast %0 : f32 to vector<2x128xf32>
    %189 = arith.mulf %177, %188 : vector<2x128xf32>
    %190 = vector.broadcast %12 : f32 to vector<2x128xf32>
    %191 = arith.mulf %183, %190 : vector<2x128xf32>
    %192 = vector.broadcast %1 : f32 to vector<2x128xf32>
    %193 = arith.mulf %179, %192 : vector<2x128xf32>
    %194 = arith.addf %189, %193 : vector<2x128xf32>
    %195 = vector.broadcast %13 : f32 to vector<2x128xf32>
    %196 = arith.mulf %185, %195 : vector<2x128xf32>
    %197 = arith.addf %191, %196 : vector<2x128xf32>
    %198 = vector.broadcast %2 : f32 to vector<2x128xf32>
    %199 = arith.mulf %181, %198 : vector<2x128xf32>
    %200 = arith.addf %194, %199 : vector<2x128xf32>
    %201 = vector.broadcast %14 : f32 to vector<2x128xf32>
    %202 = arith.mulf %187, %201 : vector<2x128xf32>
    %203 = arith.addf %197, %202 : vector<2x128xf32>
    %204 = vector.broadcast %24 : f32 to vector<2x128xf32>
    %205 = arith.addf %200, %204 : vector<2x128xf32>
    %206 = vector.broadcast %28 : f32 to vector<2x128xf32>
    %207 = arith.addf %203, %206 : vector<2x128xf32>
    %208 = arith.subf %205, %207 : vector<2x128xf32>
    %c4_125 = arith.constant 4 : index
    %c0_126 = arith.constant 0 : index
    %c0_127 = arith.constant 0 : index
    %209 = vector.load %arg7[%c4_125, %c0_126, %c0_127] : memref<8x2x128xf32, #tpu.memory_space<vmem>>, vector<1x2x128xf32>
    %210 = vector.shape_cast %209 : vector<1x2x128xf32> to vector<2x128xf32>
    %211 = vector.shape_cast %208 : vector<2x128xf32> to vector<1x2x128xf32>
    tpu.vector_store %arg7[%c4_125, %c0_126, %c0_127], %211 {strides = array<i32>} : memref<8x2x128xf32, #tpu.memory_space<vmem>>, vector<1x2x128xf32>,
    %cst_128 = arith.constant 0.000000e+00 : f32
    %212 = vector.broadcast %cst_128 : f32 to vector<2x128xf32>
    %213 = arith.subf %212, %208 : vector<2x128xf32>
    %c4_129 = arith.constant 4 : index
    %c0_130 = arith.constant 0 : index
    %c0_131 = arith.constant 0 : index
    %214 = vector.load %arg8[%c4_129, %c0_130, %c0_131] : memref<8x2x128xf32, #tpu.memory_space<vmem>>, vector<1x2x128xf32>
    %215 = vector.shape_cast %214 : vector<1x2x128xf32> to vector<2x128xf32>
    %216 = vector.shape_cast %213 : vector<2x128xf32> to vector<1x2x128xf32>
    tpu.vector_store %arg8[%c4_129, %c0_130, %c0_131], %216 {strides = array<i32>} : memref<8x2x128xf32, #tpu.memory_space<vmem>>, vector<1x2x128xf32>,
    %217 = arith.addf %205, %207 : vector<2x128xf32>
    %c4_132 = arith.constant 4 : index
    %c0_133 = arith.constant 0 : index
    %c0_134 = arith.constant 0 : index
    %218 = vector.load %arg9[%c4_132, %c0_133, %c0_134] : memref<8x2x128xf32, #tpu.memory_space<vmem>>, vector<1x2x128xf32>
    %219 = vector.shape_cast %218 : vector<1x2x128xf32> to vector<2x128xf32>
    %220 = vector.shape_cast %217 : vector<2x128xf32> to vector<1x2x128xf32>
    tpu.vector_store %arg9[%c4_132, %c0_133, %c0_134], %220 {strides = array<i32>} : memref<8x2x128xf32, #tpu.memory_space<vmem>>, vector<1x2x128xf32>,
    %221 = vector.broadcast %3 : f32 to vector<2x128xf32>
    %222 = arith.mulf %177, %221 : vector<2x128xf32>
    %223 = vector.broadcast %15 : f32 to vector<2x128xf32>
    %224 = arith.mulf %183, %223 : vector<2x128xf32>
    %225 = vector.broadcast %4 : f32 to vector<2x128xf32>
    %226 = arith.mulf %179, %225 : vector<2x128xf32>
    %227 = arith.addf %222, %226 : vector<2x128xf32>
    %228 = vector.broadcast %16 : f32 to vector<2x128xf32>
    %229 = arith.mulf %185, %228 : vector<2x128xf32>
    %230 = arith.addf %224, %229 : vector<2x128xf32>
    %231 = vector.broadcast %5 : f32 to vector<2x128xf32>
    %232 = arith.mulf %181, %231 : vector<2x128xf32>
    %233 = arith.addf %227, %232 : vector<2x128xf32>
    %234 = vector.broadcast %17 : f32 to vector<2x128xf32>
    %235 = arith.mulf %187, %234 : vector<2x128xf32>
    %236 = arith.addf %230, %235 : vector<2x128xf32>
    %237 = vector.broadcast %25 : f32 to vector<2x128xf32>
    %238 = arith.addf %233, %237 : vector<2x128xf32>
    %239 = vector.broadcast %29 : f32 to vector<2x128xf32>
    %240 = arith.addf %236, %239 : vector<2x128xf32>
    %241 = arith.subf %238, %240 : vector<2x128xf32>
    %c5_135 = arith.constant 5 : index
    %c0_136 = arith.constant 0 : index
    %c0_137 = arith.constant 0 : index
    %242 = vector.load %arg7[%c5_135, %c0_136, %c0_137] : memref<8x2x128xf32, #tpu.memory_space<vmem>>, vector<1x2x128xf32>
    %243 = vector.shape_cast %242 : vector<1x2x128xf32> to vector<2x128xf32>
    %244 = vector.shape_cast %241 : vector<2x128xf32> to vector<1x2x128xf32>
    tpu.vector_store %arg7[%c5_135, %c0_136, %c0_137], %244 {strides = array<i32>} : memref<8x2x128xf32, #tpu.memory_space<vmem>>, vector<1x2x128xf32>,
    %cst_138 = arith.constant 0.000000e+00 : f32
    %245 = vector.broadcast %cst_138 : f32 to vector<2x128xf32>
    %246 = arith.subf %245, %241 : vector<2x128xf32>
    %c5_139 = arith.constant 5 : index
    %c0_140 = arith.constant 0 : index
    %c0_141 = arith.constant 0 : index
    %247 = vector.load %arg8[%c5_139, %c0_140, %c0_141] : memref<8x2x128xf32, #tpu.memory_space<vmem>>, vector<1x2x128xf32>
    %248 = vector.shape_cast %247 : vector<1x2x128xf32> to vector<2x128xf32>
    %249 = vector.shape_cast %246 : vector<2x128xf32> to vector<1x2x128xf32>
    tpu.vector_store %arg8[%c5_139, %c0_140, %c0_141], %249 {strides = array<i32>} : memref<8x2x128xf32, #tpu.memory_space<vmem>>, vector<1x2x128xf32>,
    %250 = arith.addf %238, %240 : vector<2x128xf32>
    %c5_142 = arith.constant 5 : index
    %c0_143 = arith.constant 0 : index
    %c0_144 = arith.constant 0 : index
    %251 = vector.load %arg9[%c5_142, %c0_143, %c0_144] : memref<8x2x128xf32, #tpu.memory_space<vmem>>, vector<1x2x128xf32>
    %252 = vector.shape_cast %251 : vector<1x2x128xf32> to vector<2x128xf32>
    %253 = vector.shape_cast %250 : vector<2x128xf32> to vector<1x2x128xf32>
    tpu.vector_store %arg9[%c5_142, %c0_143, %c0_144], %253 {strides = array<i32>} : memref<8x2x128xf32, #tpu.memory_space<vmem>>, vector<1x2x128xf32>,
    %254 = vector.broadcast %6 : f32 to vector<2x128xf32>
    %255 = arith.mulf %177, %254 : vector<2x128xf32>
    %256 = vector.broadcast %18 : f32 to vector<2x128xf32>
    %257 = arith.mulf %183, %256 : vector<2x128xf32>
    %258 = vector.broadcast %7 : f32 to vector<2x128xf32>
    %259 = arith.mulf %179, %258 : vector<2x128xf32>
    %260 = arith.addf %255, %259 : vector<2x128xf32>
    %261 = vector.broadcast %19 : f32 to vector<2x128xf32>
    %262 = arith.mulf %185, %261 : vector<2x128xf32>
    %263 = arith.addf %257, %262 : vector<2x128xf32>
    %264 = vector.broadcast %8 : f32 to vector<2x128xf32>
    %265 = arith.mulf %181, %264 : vector<2x128xf32>
    %266 = arith.addf %260, %265 : vector<2x128xf32>
    %267 = vector.broadcast %20 : f32 to vector<2x128xf32>
    %268 = arith.mulf %187, %267 : vector<2x128xf32>
    %269 = arith.addf %263, %268 : vector<2x128xf32>
    %270 = vector.broadcast %26 : f32 to vector<2x128xf32>
    %271 = arith.addf %266, %270 : vector<2x128xf32>
    %272 = vector.broadcast %30 : f32 to vector<2x128xf32>
    %273 = arith.addf %269, %272 : vector<2x128xf32>
    %274 = arith.subf %271, %273 : vector<2x128xf32>
    %c6 = arith.constant 6 : index
    %c0_145 = arith.constant 0 : index
    %c0_146 = arith.constant 0 : index
    %275 = vector.load %arg7[%c6, %c0_145, %c0_146] : memref<8x2x128xf32, #tpu.memory_space<vmem>>, vector<1x2x128xf32>
    %276 = vector.shape_cast %275 : vector<1x2x128xf32> to vector<2x128xf32>
    %277 = vector.shape_cast %274 : vector<2x128xf32> to vector<1x2x128xf32>
    tpu.vector_store %arg7[%c6, %c0_145, %c0_146], %277 {strides = array<i32>} : memref<8x2x128xf32, #tpu.memory_space<vmem>>, vector<1x2x128xf32>,
    %cst_147 = arith.constant 0.000000e+00 : f32
    %278 = vector.broadcast %cst_147 : f32 to vector<2x128xf32>
    %279 = arith.subf %278, %274 : vector<2x128xf32>
    %c6_148 = arith.constant 6 : index
    %c0_149 = arith.constant 0 : index
    %c0_150 = arith.constant 0 : index
    %280 = vector.load %arg8[%c6_148, %c0_149, %c0_150] : memref<8x2x128xf32, #tpu.memory_space<vmem>>, vector<1x2x128xf32>
    %281 = vector.shape_cast %280 : vector<1x2x128xf32> to vector<2x128xf32>
    %282 = vector.shape_cast %279 : vector<2x128xf32> to vector<1x2x128xf32>
    tpu.vector_store %arg8[%c6_148, %c0_149, %c0_150], %282 {strides = array<i32>} : memref<8x2x128xf32, #tpu.memory_space<vmem>>, vector<1x2x128xf32>,
    %283 = arith.addf %271, %273 : vector<2x128xf32>
    %c6_151 = arith.constant 6 : index
    %c0_152 = arith.constant 0 : index
    %c0_153 = arith.constant 0 : index
    %284 = vector.load %arg9[%c6_151, %c0_152, %c0_153] : memref<8x2x128xf32, #tpu.memory_space<vmem>>, vector<1x2x128xf32>
    %285 = vector.shape_cast %284 : vector<1x2x128xf32> to vector<2x128xf32>
    %286 = vector.shape_cast %283 : vector<2x128xf32> to vector<1x2x128xf32>
    tpu.vector_store %arg9[%c6_151, %c0_152, %c0_153], %286 {strides = array<i32>} : memref<8x2x128xf32, #tpu.memory_space<vmem>>, vector<1x2x128xf32>,
    %287 = vector.broadcast %9 : f32 to vector<2x128xf32>
    %288 = arith.mulf %177, %287 : vector<2x128xf32>
    %289 = vector.broadcast %21 : f32 to vector<2x128xf32>
    %290 = arith.mulf %183, %289 : vector<2x128xf32>
    %291 = vector.broadcast %10 : f32 to vector<2x128xf32>
    %292 = arith.mulf %179, %291 : vector<2x128xf32>
    %293 = arith.addf %288, %292 : vector<2x128xf32>
    %294 = vector.broadcast %22 : f32 to vector<2x128xf32>
    %295 = arith.mulf %185, %294 : vector<2x128xf32>
    %296 = arith.addf %290, %295 : vector<2x128xf32>
    %297 = vector.broadcast %11 : f32 to vector<2x128xf32>
    %298 = arith.mulf %181, %297 : vector<2x128xf32>
    %299 = arith.addf %293, %298 : vector<2x128xf32>
    %300 = vector.broadcast %23 : f32 to vector<2x128xf32>
    %301 = arith.mulf %187, %300 : vector<2x128xf32>
    %302 = arith.addf %296, %301 : vector<2x128xf32>
    %303 = vector.broadcast %27 : f32 to vector<2x128xf32>
    %304 = arith.addf %299, %303 : vector<2x128xf32>
    %305 = vector.broadcast %31 : f32 to vector<2x128xf32>
    %306 = arith.addf %302, %305 : vector<2x128xf32>
    %307 = arith.subf %304, %306 : vector<2x128xf32>
    %c7 = arith.constant 7 : index
    %c0_154 = arith.constant 0 : index
    %c0_155 = arith.constant 0 : index
    %308 = vector.load %arg7[%c7, %c0_154, %c0_155] : memref<8x2x128xf32, #tpu.memory_space<vmem>>, vector<1x2x128xf32>
    %309 = vector.shape_cast %308 : vector<1x2x128xf32> to vector<2x128xf32>
    %310 = vector.shape_cast %307 : vector<2x128xf32> to vector<1x2x128xf32>
    tpu.vector_store %arg7[%c7, %c0_154, %c0_155], %310 {strides = array<i32>} : memref<8x2x128xf32, #tpu.memory_space<vmem>>, vector<1x2x128xf32>,
    %cst_156 = arith.constant 0.000000e+00 : f32
    %311 = vector.broadcast %cst_156 : f32 to vector<2x128xf32>
    %312 = arith.subf %311, %307 : vector<2x128xf32>
    %c7_157 = arith.constant 7 : index
    %c0_158 = arith.constant 0 : index
    %c0_159 = arith.constant 0 : index
    %313 = vector.load %arg8[%c7_157, %c0_158, %c0_159] : memref<8x2x128xf32, #tpu.memory_space<vmem>>, vector<1x2x128xf32>
    %314 = vector.shape_cast %313 : vector<1x2x128xf32> to vector<2x128xf32>
    %315 = vector.shape_cast %312 : vector<2x128xf32> to vector<1x2x128xf32>
    tpu.vector_store %arg8[%c7_157, %c0_158, %c0_159], %315 {strides = array<i32>} : memref<8x2x128xf32, #tpu.memory_space<vmem>>, vector<1x2x128xf32>,
    %316 = arith.addf %304, %306 : vector<2x128xf32>
    %c7_160 = arith.constant 7 : index
    %c0_161 = arith.constant 0 : index
    %c0_162 = arith.constant 0 : index
    %317 = vector.load %arg9[%c7_160, %c0_161, %c0_162] : memref<8x2x128xf32, #tpu.memory_space<vmem>>, vector<1x2x128xf32>
    %318 = vector.shape_cast %317 : vector<1x2x128xf32> to vector<2x128xf32>
    %319 = vector.shape_cast %316 : vector<2x128xf32> to vector<1x2x128xf32>
    tpu.vector_store %arg9[%c7_160, %c0_161, %c0_162], %319 {strides = array<i32>} : memref<8x2x128xf32, #tpu.memory_space<vmem>>, vector<1x2x128xf32>,
    return
  }
  func.func @transform_0(%arg0: i32) -> (i32, i32, i32) {
    %c0_i32 = arith.constant 0 : i32
    %c0_i32_0 = arith.constant 0 : i32
    %c0_i32_1 = arith.constant 0 : i32
    return %c0_i32, %arg0, %c0_i32_0 : i32, i32, i32
  }
  func.func @transform_1(%arg0: i32) -> (i32, i32, i32) {
    %c0_i32 = arith.constant 0 : i32
    %c0_i32_0 = arith.constant 0 : i32
    %c0_i32_1 = arith.constant 0 : i32
    return %c0_i32, %arg0, %c0_i32_0 : i32, i32, i32
  }
  func.func @transform_2(%arg0: i32) -> (i32, i32) {
    %c0_i32 = arith.constant 0 : i32
    %c0_i32_0 = arith.constant 0 : i32
    %c0_i32_1 = arith.constant 0 : i32
    return %c0_i32, %c0_i32_0 : i32, i32
  }
  func.func @transform_3(%arg0: i32) -> i32 {
    %c0_i32 = arith.constant 0 : i32
    %c0_i32_0 = arith.constant 0 : i32
    return %c0_i32 : i32
  }
  func.func @transform_4(%arg0: i32) -> (i32, i32) {
    %c0_i32 = arith.constant 0 : i32
    %c0_i32_0 = arith.constant 0 : i32
    %c0_i32_1 = arith.constant 0 : i32
    return %c0_i32, %c0_i32_0 : i32, i32
  }
  func.func @transform_5(%arg0: i32) -> i32 {
    %c0_i32 = arith.constant 0 : i32
    %c0_i32_0 = arith.constant 0 : i32
    return %c0_i32 : i32
  }
  func.func @transform_6(%arg0: i32) -> (i32, i32, i32) {
    %c0_i32 = arith.constant 0 : i32
    %c0_i32_0 = arith.constant 0 : i32
    %c0_i32_1 = arith.constant 0 : i32
    return %c0_i32, %arg0, %c0_i32_0 : i32, i32, i32
  }
  func.func @transform_7(%arg0: i32) -> (i32, i32, i32) {
    %c0_i32 = arith.constant 0 : i32
    %c0_i32_0 = arith.constant 0 : i32
    %c0_i32_1 = arith.constant 0 : i32
    return %c0_i32, %arg0, %c0_i32_0 : i32, i32, i32
  }
  func.func @transform_8(%arg0: i32) -> (i32, i32, i32) {
    %c0_i32 = arith.constant 0 : i32
    %c0_i32_0 = arith.constant 0 : i32
    %c0_i32_1 = arith.constant 0 : i32
    return %c0_i32, %arg0, %c0_i32_0 : i32, i32, i32
  }
}

</mosaic_0001>

<llo_original>
// kernel: tpu_custom_call.1
$region0: #{tpu_custom_call.1}
  #allocation0 [shape = 'u32[]', space=smem, size = 0x4, offset = 0x4, fixed_abs, tag = 'smem constant byte address 0x4 - core index']
  #allocation1 [shape = 'u32[144,128]{1,0:T(1,128)}', space=vmem, size = 0x12000, scoped, tag = 'internal scratch']
  %s0 = inlined_call_operand.hbm [shape: f32[6,2,128], index: 0, kind: input, shape index: {}]
  %s1 = inlined_call_operand.hbm [shape: f32[6,2,128], index: 1, kind: input, shape index: {}]
  %s2 = inlined_call_operand.vmem [shape: f32[4,3], index: 2, kind: input, shape index: {}]
  %s3 = inlined_call_operand.vmem [shape: f32[4], index: 3, kind: input, shape index: {}]
  %s4 = inlined_call_operand.vmem [shape: f32[4,3], index: 4, kind: input, shape index: {}]
  %s5 = inlined_call_operand.vmem [shape: f32[4], index: 5, kind: input, shape index: {}]
  %s6 = inlined_call_operand.hbm [shape: f32[8,2,128], index: 6, kind: output, shape index: {0}]
  %s7 = inlined_call_operand.hbm [shape: f32[8,2,128], index: 7, kind: output, shape index: {1}]
  %s8 = inlined_call_operand.hbm [shape: f32[8,2,128], index: 8, kind: output, shape index: {2}]
  %9 = xla_tuple %s6, %s7, %s8
  %s10 = sld [smem:[#allocation0]]
  $region74: #{tpu_custom_call.1} parent=0
    _
  %s12 = ssub.s32 1, %s10
  %s13 = scalar_select 0, %s12, %s10
  $region1: #{tpu_custom_call.1} parent=0
    #allocation2 [shape = 'u8[6144]{0}', space=vmem, size = 0x1800, scoped, tag = 'input window, operand 0, single buffered']
    #allocation3 [shape = 's32[1]{0}', space=sflag, size = 0x4, scoped, tag = 'scoped memory for tpu_custom_call.1']
    #allocation4 [shape = 's32[1]{0}', space=sflag, size = 0x4, scoped, tag = 'scoped memory for tpu_custom_call.1']
    #allocation5 [shape = 's32[1]{0}', space=sflag, size = 0x4, scoped, tag = 'scoped memory for tpu_custom_call.1']
    #allocation6 [shape = 'u8[6144]{0}', space=vmem, size = 0x1800, scoped, tag = 'input window, operand 1, single buffered']
    #allocation7 [shape = 's32[1]{0}', space=sflag, size = 0x4, scoped, tag = 'scoped memory for tpu_custom_call.1']
    #allocation8 [shape = 'u8[2048]{0}', space=smem, size = 0x800, scoped, tag = 'input window, operand 2, single buffered']
    #allocation9 [shape = 'u8[512]{0}', space=smem, size = 0x200, scoped, tag = 'input window, operand 3, single buffered']
    #allocation10 [shape = 's32[1]{0}', space=sflag, size = 0x4, scoped, tag = 'scoped memory for tpu_custom_call.1']
    #allocation11 [shape = 'u8[2048]{0}', space=smem, size = 0x800, scoped, tag = 'input window, operand 4, single buffered']
    #allocation12 [shape = 'u8[512]{0}', space=smem, size = 0x200, scoped, tag = 'input window, operand 5, single buffered']
    #allocation13 [shape = 's32[1]{0}', space=sflag, size = 0x4, scoped, tag = 'scoped memory for tpu_custom_call.1']
    #allocation14 [shape = 'u8[8192]{0}', space=vmem, size = 0x2000, scoped, tag = 'output window, operand 0, single buffered']
    #allocation15 [shape = 'u8[8192]{0}', space=vmem, size = 0x2000, scoped, tag = 'output window, operand 1, single buffered']
    #allocation16 [shape = 's32[1]{0}', space=sflag, size = 0x4, scoped, tag = 'scoped memory for tpu_custom_call.1']
    #allocation17 [shape = 'u8[8192]{0}', space=vmem, size = 0x2000, scoped, tag = 'output window, operand 2, single buffered']
    %14 = vsyncpa [#allocation3], 0
    %15 = vsyncpa [#allocation7], 0
    %16 = vsyncpa [#allocation5], 0
    %17 = vsyncpa [#allocation10], 0
    %18 = vsyncpa [#allocation13], 0
    %19 = vsyncpa [#allocation4], 0
    %20 = vsyncpa [#allocation16], 0
    // Predicated region
    $region2: #{tpu_custom_call.1} parent=1 // pred_check
      _
    $region3: #{tpu_custom_call.1} parent=1 // pred_check_branch
      %22 = sbr.rel (0) target = $region5
    $region4: #{tpu_custom_call.1} parent=1 // pred_region
      %s24 = ssub.s32 192, 192
      %25 = vsyncadd [#allocation3], %s24
      %s26 = sshll.u32 [#allocation2], 4
      %s27 = int_to_ptr.vmem [resolvable:$true] %s26
      %32 = dma.hbm_to_vmem [thread:$0]  %s0, 192, %s27, [#allocation3], 32, 32, 2
    $region5: #{tpu_custom_call.1} parent=1 // pred_fallthru
      _
    // Predicated region
    $region6: #{tpu_custom_call.1} parent=1 // pred_check
      _
    $region7: #{tpu_custom_call.1} parent=1 // pred_check_branch
      %34 = sbr.rel (0) target = $region9
    $region8: #{tpu_custom_call.1} parent=1 // pred_region
      %s36 = ssub.s32 192, 192
      %37 = vsyncadd [#allocation7], %s36
      %s38 = sshll.u32 [#allocation6], 4
      %s39 = int_to_ptr.vmem [resolvable:$true] %s38
      %44 = dma.hbm_to_vmem [thread:$0]  %s1, 192, %s39, [#allocation7], 32, 32, 2
    $region9: #{tpu_custom_call.1} parent=1 // pred_fallthru
      _
    // Predicated region
    $region10: #{tpu_custom_call.1} parent=1 // pred_check
      _
    $region11: #{tpu_custom_call.1} parent=1 // pred_check_branch
      %46 = sbr.rel (0) target = $region13
    $region12: #{tpu_custom_call.1} parent=1 // pred_region
      %s48 = ssub.s32 64, 64
      %49 = vsyncadd [#allocation5], %s48
      %s51 = sshll.u32 %s2, 4
      %s52 = int_to_ptr.vmem [resolvable:$true] %s51
      %54 = dma.vmem_to_smem %s52, 64, [#allocation8], [#allocation5]
    $region13: #{tpu_custom_call.1} parent=1 // pred_fallthru
      _
    // Predicated region
    $region14: #{tpu_custom_call.1} parent=1 // pred_check
      _
    $region15: #{tpu_custom_call.1} parent=1 // pred_check_branch
      %56 = sbr.rel (0) target = $region17
    $region16: #{tpu_custom_call.1} parent=1 // pred_region
      %s58 = ssub.s32 16, 16
      %59 = vsyncadd [#allocation10], %s58
      %s61 = sshll.u32 %s3, 4
      %s62 = int_to_ptr.vmem [resolvable:$true] %s61
      %64 = dma.vmem_to_smem %s62, 16, [#allocation9], [#allocation10]
    $region17: #{tpu_custom_call.1} parent=1 // pred_fallthru
      _
    // Predicated region
    $region18: #{tpu_custom_call.1} parent=1 // pred_check
      _
    $region19: #{tpu_custom_call.1} parent=1 // pred_check_branch
      %66 = sbr.rel (0) target = $region21
    $region20: #{tpu_custom_call.1} parent=1 // pred_region
      %s68 = ssub.s32 64, 64
      %69 = vsyncadd [#allocation10], %s68
      %s71 = sshll.u32 %s4, 4
      %s72 = int_to_ptr.vmem [resolvable:$true] %s71
      %74 = dma.vmem_to_smem %s72, 64, [#allocation11], [#allocation10]
    $region21: #{tpu_custom_call.1} parent=1 // pred_fallthru
      _
    // Predicated region
    $region22: #{tpu_custom_call.1} parent=1 // pred_check
      _
    $region23: #{tpu_custom_call.1} parent=1 // pred_check_branch
      %76 = sbr.rel (0) target = $region25
    $region24: #{tpu_custom_call.1} parent=1 // pred_region
      %s78 = ssub.s32 16, 16
      %79 = vsyncadd [#allocation13], %s78
      %s81 = sshll.u32 %s5, 4
      %s82 = int_to_ptr.vmem [resolvable:$true] %s81
      %84 = dma.vmem_to_smem %s82, 16, [#allocation12], [#allocation13]
    $region25: #{tpu_custom_call.1} parent=1 // pred_fallthru
      _
    // Predicated region
    $region26: #{tpu_custom_call.1} parent=1 // pred_check
      _
    $region27: #{tpu_custom_call.1} parent=1 // pred_check_branch
      %86 = sbr.rel (0) target = $region29
    $region28: #{tpu_custom_call.1} parent=1 // pred_region
      %87 = dma.done [#allocation3], 192
    $region29: #{tpu_custom_call.1} parent=1 // pred_fallthru
      _
    // Predicated region
    $region30: #{tpu_custom_call.1} parent=1 // pred_check
      _
    $region31: #{tpu_custom_call.1} parent=1 // pred_check_branch
      %89 = sbr.rel (0) target = $region33
    $region32: #{tpu_custom_call.1} parent=1 // pred_region
      %90 = dma.done [#allocation7], 192
    $region33: #{tpu_custom_call.1} parent=1 // pred_fallthru
      _
    // Predicated region
    $region34: #{tpu_custom_call.1} parent=1 // pred_check
      _
    $region35: #{tpu_custom_call.1} parent=1 // pred_check_branch
      %92 = sbr.rel (0) target = $region37
    $region36: #{tpu_custom_call.1} parent=1 // pred_region
      %93 = dma.done [#allocation5], 64
    $region37: #{tpu_custom_call.1} parent=1 // pred_fallthru
      _
    // Predicated region
    $region38: #{tpu_custom_call.1} parent=1 // pred_check
      _
    $region39: #{tpu_custom_call.1} parent=1 // pred_check_branch
      %95 = sbr.rel (0) target = $region41
    $region40: #{tpu_custom_call.1} parent=1 // pred_region
      %96 = dma.done [#allocation10], 16
    $region41: #{tpu_custom_call.1} parent=1 // pred_fallthru
      _
    // Predicated region
    $region42: #{tpu_custom_call.1} parent=1 // pred_check
      _
    $region43: #{tpu_custom_call.1} parent=1 // pred_check_branch
      %98 = sbr.rel (0) target = $region45
    $region44: #{tpu_custom_call.1} parent=1 // pred_region
      %99 = dma.done [#allocation10], 64
    $region45: #{tpu_custom_call.1} parent=1 // pred_fallthru
      _
    // Predicated region
    $region46: #{tpu_custom_call.1} parent=1 // pred_check
      _
    $region47: #{tpu_custom_call.1} parent=1 // pred_check_branch
      %101 = sbr.rel (0) target = $region49
    $region48: #{tpu_custom_call.1} parent=1 // pred_region
      %102 = dma.done [#allocation13], 16
    $region49: #{tpu_custom_call.1} parent=1 // pred_fallthru
      _
    %103 = sfence
    %s104 = sld [smem:[#allocation8]]
    %s105 = sld [smem:[#allocation8 + $0x1]]
    %s106 = sld [smem:[#allocation8 + $0x2]]
    %s107 = sld [smem:[#allocation8 + $0x80]]
    %s108 = sld [smem:[#allocation8 + $0x81]]
    %s109 = sld [smem:[#allocation8 + $0x82]]
    %s110 = sld [smem:[#allocation8 + $0x100]]
    %s111 = sld [smem:[#allocation8 + $0x101]]
    %s112 = sld [smem:[#allocation8 + $0x102]]
    %s113 = sld [smem:[#allocation8 + $0x180]]
    %s114 = sld [smem:[#allocation8 + $0x181]]
    %s115 = sld [smem:[#allocation8 + $0x182]]
    %s116 = sld [smem:[#allocation11]]
    %s117 = sld [smem:[#allocation11 + $0x1]]
    %s118 = sld [smem:[#allocation11 + $0x2]]
    %s119 = sld [smem:[#allocation11 + $0x80]]
    %s120 = sld [smem:[#allocation11 + $0x81]]
    %s121 = sld [smem:[#allocation11 + $0x82]]
    %s122 = sld [smem:[#allocation11 + $0x100]]
    %s123 = sld [smem:[#allocation11 + $0x101]]
    %s124 = sld [smem:[#allocation11 + $0x102]]
    %s125 = sld [smem:[#allocation11 + $0x180]]
    %s126 = sld [smem:[#allocation11 + $0x181]]
    %s127 = sld [smem:[#allocation11 + $0x182]]
    %s128 = sld [smem:[#allocation9]]
    %s129 = sld [smem:[#allocation9 + $0x1]]
    %s130 = sld [smem:[#allocation9 + $0x2]]
    %s131 = sld [smem:[#allocation9 + $0x3]]
    %s132 = sld [smem:[#allocation12]]
    %s133 = sld [smem:[#allocation12 + $0x1]]
    %s134 = sld [smem:[#allocation12 + $0x2]]
    %s135 = sld [smem:[#allocation12 + $0x3]]
    %v136 = vld [vmem:[#allocation2] sm:$0x3]
    %s137 = scalar_lea.vmem [#allocation2], 2
    %v138 = vld [vmem:[%s137] sm:$0x3]
    %s139 = scalar_lea.vmem [#allocation2], 4
    %v140 = vld [vmem:[%s139] sm:$0x3]
    %v141 = vld [vmem:[#allocation6] sm:$0x3]
    %s142 = scalar_lea.vmem [#allocation6], 2
    %v143 = vld [vmem:[%s142] sm:$0x3]
    %s144 = scalar_lea.vmem [#allocation6], 4
    %v145 = vld [vmem:[%s144] sm:$0x3]
    %v146 = vstv %s104
    %v147 = vmul.f32 %v136, %v146
    %v148 = vstv %s116
    %v149 = vmul.f32 %v141, %v148
    %v150 = vstv %s105
    %v151 = vmul.f32 %v138, %v150
    %v152 = vadd.f32 %v147, %v151
    %v153 = vstv %s117
    %v154 = vmul.f32 %v143, %v153
    %v155 = vadd.f32 %v149, %v154
    %v156 = vstv %s106
    %v157 = vmul.f32 %v140, %v156
    %v158 = vadd.f32 %v152, %v157
    %v159 = vstv %s118
    %v160 = vmul.f32 %v145, %v159
    %v161 = vadd.f32 %v155, %v160
    %v162 = vstv %s128
    %v163 = vadd.f32 %v158, %v162
    %v164 = vstv %s132
    %v165 = vadd.f32 %v161, %v164
    %v166 = vsub.f32 %v163, %v165
    %167 = vst [vmem:[#allocation14] sm:$0x3] %v166
    %v168 = vsub.f32 0.0, %v166
    %169 = vst [vmem:[#allocation15] sm:$0x3] %v168
    %v170 = vadd.f32 %v163, %v165
    %171 = vst [vmem:[#allocation17] sm:$0x3] %v170
    %v172 = vstv %s107
    %v173 = vmul.f32 %v136, %v172
    %v174 = vstv %s119
    %v175 = vmul.f32 %v141, %v174
    %v176 = vstv %s108
    %v177 = vmul.f32 %v138, %v176
    %v178 = vadd.f32 %v173, %v177
    %v179 = vstv %s120
    %v180 = vmul.f32 %v143, %v179
    %v181 = vadd.f32 %v175, %v180
    %v182 = vstv %s109
    %v183 = vmul.f32 %v140, %v182
    %v184 = vadd.f32 %v178, %v183
    %v185 = vstv %s121
    %v186 = vmul.f32 %v145, %v185
    %v187 = vadd.f32 %v181, %v186
    %v188 = vstv %s129
    %v189 = vadd.f32 %v184, %v188
    %v190 = vstv %s133
    %v191 = vadd.f32 %v187, %v190
    %v192 = vsub.f32 %v189, %v191
    %s193 = scalar_lea.vmem [#allocation14], 2
    %194 = vst [vmem:[%s193] sm:$0x3] %v192
    %v195 = vsub.f32 0.0, %v192
    %s196 = scalar_lea.vmem [#allocation15], 2
    %197 = vst [vmem:[%s196] sm:$0x3] %v195
    %v198 = vadd.f32 %v189, %v191
    %s199 = scalar_lea.vmem [#allocation17], 2
    %200 = vst [vmem:[%s199] sm:$0x3] %v198
    %v201 = vstv %s110
    %v202 = vmul.f32 %v136, %v201
    %v203 = vstv %s122
    %v204 = vmul.f32 %v141, %v203
    %v205 = vstv %s111
    %v206 = vmul.f32 %v138, %v205
    %v207 = vadd.f32 %v202, %v206
    %v208 = vstv %s123
    %v209 = vmul.f32 %v143, %v208
    %v210 = vadd.f32 %v204, %v209
    %v211 = vstv %s112
    %v212 = vmul.f32 %v140, %v211
    %v213 = vadd.f32 %v207, %v212
    %v214 = vstv %s124
    %v215 = vmul.f32 %v145, %v214
    %v216 = vadd.f32 %v210, %v215
    %v217 = vstv %s130
    %v218 = vadd.f32 %v213, %v217
    %v219 = vstv %s134
    %v220 = vadd.f32 %v216, %v219
    %v221 = vsub.f32 %v218, %v220
    %s222 = scalar_lea.vmem [#allocation14], 4
    %223 = vst [vmem:[%s222] sm:$0x3] %v221
    %v224 = vsub.f32 0.0, %v221
    %s225 = scalar_lea.vmem [#allocation15], 4
    %226 = vst [vmem:[%s225] sm:$0x3] %v224
    %v227 = vadd.f32 %v218, %v220
    %s228 = scalar_lea.vmem [#allocation17], 4
    %229 = vst [vmem:[%s228] sm:$0x3] %v227
    %v230 = vstv %s113
    %v231 = vmul.f32 %v136, %v230
    %v232 = vstv %s125
    %v233 = vmul.f32 %v141, %v232
    %v234 = vstv %s114
    %v235 = vmul.f32 %v138, %v234
    %v236 = vadd.f32 %v231, %v235
    %v237 = vstv %s126
    %v238 = vmul.f32 %v143, %v237
    %v239 = vadd.f32 %v233, %v238
    %v240 = vstv %s115
    %v241 = vmul.f32 %v140, %v240
    %v242 = vadd.f32 %v236, %v241
    %v243 = vstv %s127
    %v244 = vmul.f32 %v145, %v243
    %v245 = vadd.f32 %v239, %v244
    %v246 = vstv %s131
    %v247 = vadd.f32 %v242, %v246
    %v248 = vstv %s135
    %v249 = vadd.f32 %v245, %v248
    %v250 = vsub.f32 %v247, %v249
    %s251 = scalar_lea.vmem [#allocation14], 6
    %252 = vst [vmem:[%s251] sm:$0x3] %v250
    %v253 = vsub.f32 0.0, %v250
    %s254 = scalar_lea.vmem [#allocation15], 6
    %255 = vst [vmem:[%s254] sm:$0x3] %v253
    %v256 = vadd.f32 %v247, %v249
    %s257 = scalar_lea.vmem [#allocation17], 6
    %258 = vst [vmem:[%s257] sm:$0x3] %v256
    %s259 = scalar_lea.vmem [#allocation2], 6
    %v260 = vld [vmem:[%s259] sm:$0x3]
    %s261 = scalar_lea.vmem [#allocation2], 8
    %v262 = vld [vmem:[%s261] sm:$0x3]
    %s263 = scalar_lea.vmem [#allocation2], 10
    %v264 = vld [vmem:[%s263] sm:$0x3]
    %s265 = scalar_lea.vmem [#allocation6], 6
    %v266 = vld [vmem:[%s265] sm:$0x3]
    %s267 = scalar_lea.vmem [#allocation6], 8
    %v268 = vld [vmem:[%s267] sm:$0x3]
    %s269 = scalar_lea.vmem [#allocation6], 10
    %v270 = vld [vmem:[%s269] sm:$0x3]
    %v271 = vmul.f32 %v260, %v146
    %v272 = vmul.f32 %v266, %v148
    %v273 = vmul.f32 %v262, %v150
    %v274 = vadd.f32 %v271, %v273
    %v275 = vmul.f32 %v268, %v153
    %v276 = vadd.f32 %v272, %v275
    %v277 = vmul.f32 %v264, %v156
    %v278 = vadd.f32 %v274, %v277
    %v279 = vmul.f32 %v270, %v159
    %v280 = vadd.f32 %v276, %v279
    %v281 = vadd.f32 %v278, %v162
    %v282 = vadd.f32 %v280, %v164
    %v283 = vsub.f32 %v281, %v282
    %s284 = scalar_lea.vmem [#allocation14], 8
    %285 = vst [vmem:[%s284] sm:$0x3] %v283
    %v286 = vsub.f32 0.0, %v283
    %s287 = scalar_lea.vmem [#allocation15], 8
    %288 = vst [vmem:[%s287] sm:$0x3] %v286
    %v289 = vadd.f32 %v281, %v282
    %s290 = scalar_lea.vmem [#allocation17], 8
    %291 = vst [vmem:[%s290] sm:$0x3] %v289
    %v292 = vmul.f32 %v260, %v172
    %v293 = vmul.f32 %v266, %v174
    %v294 = vmul.f32 %v262, %v176
    %v295 = vadd.f32 %v292, %v294
    %v296 = vmul.f32 %v268, %v179
    %v297 = vadd.f32 %v293, %v296
    %v298 = vmul.f32 %v264, %v182
    %v299 = vadd.f32 %v295, %v298
    %v300 = vmul.f32 %v270, %v185
    %v301 = vadd.f32 %v297, %v300
    %v302 = vadd.f32 %v299, %v188
    %v303 = vadd.f32 %v301, %v190
    %v304 = vsub.f32 %v302, %v303
    %s305 = scalar_lea.vmem [#allocation14], 10
    %306 = vst [vmem:[%s305] sm:$0x3] %v304
    %v307 = vsub.f32 0.0, %v304
    %s308 = scalar_lea.vmem [#allocation15], 10
    %309 = vst [vmem:[%s308] sm:$0x3] %v307
    %v310 = vadd.f32 %v302, %v303
    %s311 = scalar_lea.vmem [#allocation17], 10
    %312 = vst [vmem:[%s311] sm:$0x3] %v310
    %v313 = vmul.f32 %v260, %v201
    %v314 = vmul.f32 %v266, %v203
    %v315 = vmul.f32 %v262, %v205
    %v316 = vadd.f32 %v313, %v315
    %v317 = vmul.f32 %v268, %v208
    %v318 = vadd.f32 %v314, %v317
    %v319 = vmul.f32 %v264, %v211
    %v320 = vadd.f32 %v316, %v319
    %v321 = vmul.f32 %v270, %v214
    %v322 = vadd.f32 %v318, %v321
    %v323 = vadd.f32 %v320, %v217
    %v324 = vadd.f32 %v322, %v219
    %v325 = vsub.f32 %v323, %v324
    %s326 = scalar_lea.vmem [#allocation14], 12
    %327 = vst [vmem:[%s326] sm:$0x3] %v325
    %v328 = vsub.f32 0.0, %v325
    %s329 = scalar_lea.vmem [#allocation15], 12
    %330 = vst [vmem:[%s329] sm:$0x3] %v328
    %v331 = vadd.f32 %v323, %v324
    %s332 = scalar_lea.vmem [#allocation17], 12
    %333 = vst [vmem:[%s332] sm:$0x3] %v331
    %v334 = vmul.f32 %v260, %v230
    %v335 = vmul.f32 %v266, %v232
    %v336 = vmul.f32 %v262, %v234
    %v337 = vadd.f32 %v334, %v336
    %v338 = vmul.f32 %v268, %v237
    %v339 = vadd.f32 %v335, %v338
    %v340 = vmul.f32 %v264, %v240
    %v341 = vadd.f32 %v337, %v340
    %v342 = vmul.f32 %v270, %v243
    %v343 = vadd.f32 %v339, %v342
    %v344 = vadd.f32 %v341, %v246
    %v345 = vadd.f32 %v343, %v248
    %v346 = vsub.f32 %v344, %v345
    %s347 = scalar_lea.vmem [#allocation14], 14
    %348 = vst [vmem:[%s347] sm:$0x3] %v346
    %v349 = vsub.f32 0.0, %v346
    %s350 = scalar_lea.vmem [#allocation15], 14
    %351 = vst [vmem:[%s350] sm:$0x3] %v349
    %v352 = vadd.f32 %v344, %v345
    %s353 = scalar_lea.vmem [#allocation17], 14
    %354 = vst [vmem:[%s353] sm:$0x3] %v352
    // Predicated region
    $region50: #{tpu_custom_call.1} parent=1 // pred_check
      _
    $region51: #{tpu_custom_call.1} parent=1 // pred_check_branch
      %356 = sbr.rel (0) target = $region53
    $region52: #{tpu_custom_call.1} parent=1 // pred_region
      %s358 = ssub.s32 256, 256
      %359 = vsyncadd [#allocation4], %s358
      %s360 = sshll.u32 [#allocation14], 4
      %s361 = int_to_ptr.vmem [resolvable:$true] %s360
      %366 = dma.vmem_to_hbm [thread:$0]  %s361, 256, %s6, [#allocation4], 32, 32, 2
    $region53: #{tpu_custom_call.1} parent=1 // pred_fallthru
      _
    // Predicated region
    $region54: #{tpu_custom_call.1} parent=1 // pred_check
      _
    $region55: #{tpu_custom_call.1} parent=1 // pred_check_branch
      %368 = sbr.rel (0) target = $region57
    $region56: #{tpu_custom_call.1} parent=1 // pred_region
      %s370 = ssub.s32 256, 256
      %371 = vsyncadd [#allocation16], %s370
      %s372 = sshll.u32 [#allocation15], 4
      %s373 = int_to_ptr.vmem [resolvable:$true] %s372
      %378 = dma.vmem_to_hbm [thread:$0]  %s373, 256, %s7, [#allocation16], 32, 32, 2
    $region57: #{tpu_custom_call.1} parent=1 // pred_fallthru
      _
    // Predicated region
    $region58: #{tpu_custom_call.1} parent=1 // pred_check
      _
    $region59: #{tpu_custom_call.1} parent=1 // pred_check_branch
      %380 = sbr.rel (0) target = $region61
    $region60: #{tpu_custom_call.1} parent=1 // pred_region
      %s382 = ssub.s32 256, 256
      %383 = vsyncadd [#allocation16], %s382
      %s384 = sshll.u32 [#allocation17], 4
      %s385 = int_to_ptr.vmem [resolvable:$true] %s384
      %390 = dma.vmem_to_hbm [thread:$0]  %s385, 256, %s8, [#allocation16], 32, 32, 2
    $region61: #{tpu_custom_call.1} parent=1 // pred_fallthru
      _
    // Predicated region
    $region62: #{tpu_custom_call.1} parent=1 // pred_check
      _
    $region63: #{tpu_custom_call.1} parent=1 // pred_check_branch
      %392 = sbr.rel (0) target = $region65
    $region64: #{tpu_custom_call.1} parent=1 // pred_region
      %393 = dma.done [#allocation4], 256
    $region65: #{tpu_custom_call.1} parent=1 // pred_fallthru
      _
    // Predicated region
    $region66: #{tpu_custom_call.1} parent=1 // pred_check
      _
    $region67: #{tpu_custom_call.1} parent=1 // pred_check_branch
      %395 = sbr.rel (0) target = $region69
    $region68: #{tpu_custom_call.1} parent=1 // pred_region
      %396 = dma.done [#allocation16], 256
    $region69: #{tpu_custom_call.1} parent=1 // pred_fallthru
      _
    // Predicated region
    $region70: #{tpu_custom_call.1} parent=1 // pred_check
      _
    $region71: #{tpu_custom_call.1} parent=1 // pred_check_branch
      %398 = sbr.rel (0) target = $region73
    $region72: #{tpu_custom_call.1} parent=1 // pred_region
      %399 = dma.done [#allocation16], 256
    $region73: #{tpu_custom_call.1} parent=1 // pred_fallthru
      _
    %400 = vsyncpa [#allocation3], 1
    %401 = vsyncpa [#allocation7], 1
    %402 = vsyncpa [#allocation4], 1
    %403 = vsyncpa [#allocation16], 1
    %404 = vsyncpa [#allocation5], 1
    %405 = vsyncpa [#allocation10], 1
    %406 = vsyncpa [#allocation13], 1

</llo_original>
